<compile_context>
chip_gen: v6e
topology: v6e:2x2x1
jax: 0.10.0
libtpu: 0.0.40
codegen_flags: <defaults>
</compile_context>

<pallas_src>
import jax
import jax.numpy as jnp
from jax import lax
from jax.experimental import pallas as pl
from jax.experimental.pallas import tpu as pltpu


def _round_up(n, m):
    return ((n + m - 1) // m) * m


def rnn_kernel(add_ref, w_ref, hist_ref, s_ref):
    # add_ref  : (TT, BB, 2H)  per-step additive term [xw_i | b1], time-major
    # w_ref    : (2H, 2H)      block weight [[Whh0, Wih1], [0, Whh1]]
    # hist_ref : (TT, BB, 2H)  packed state history s_i = [h1_i , h2_{i-1}] (lane-dense)
    # s_ref    : (BB, 2H)      carried packed state (persists across the time grid axis)
    TT = add_ref.shape[0]

    @pl.when(pl.program_id(1) == 0)
    def _():
        s_ref[...] = jnp.zeros_like(s_ref)

    w = w_ref[...]

    def step(i, s):
        # One lane-dense matmul + one tanh per timestep:
        #   cols [:H] -> layer-0 recurrent term, cols [H:] -> layer-1 pre-activation.
        s = jnp.tanh(jnp.dot(s, w, preferred_element_type=jnp.float32) + add_ref[i])
        hist_ref[i] = s                       # full 128-lane store, no masked vst
        return s

    s = lax.fori_loop(0, TT, step, s_ref[...], unroll=True if TT <= 16 else 8)
    s_ref[...] = s


def rnn_model_forward(x, params):
    """x: (B, T, input_dim) float32 -> (B, T, output_dim) float32."""
    B, T, _ = x.shape
    H = params["whh0"].shape[0]
    H2 = 2 * H
    hp = lax.Precision.HIGHEST

    # ---- batch blocking: multiple of 8 sublanes, <=128, >=2 blocks when B allows ----
    B8 = _round_up(B, 8)
    if B8 <= 8:
        BB = 8
    else:
        BB = min(128, _round_up(-(-B8 // 2), 8))
    B_pad = _round_up(B8, BB)

    # ---- hoisted layer-0 input projection fused with batch_first -> time-major ----
    xw = jnp.einsum("btd,dh->tbh", x, params["wih0"], precision=hp) + params["b0"]
    if B_pad != B:
        xw = jnp.pad(xw, ((0, 0), (0, B_pad - B), (0, 0)))          # (T, B_pad, H)

    # ---- per-step additive tensor for the packed recurrence ----
    # s_i = tanh(s_{i-1} @ W + add_i), s_{-1} = 0:
    #   add_0 = [xw_0 | 0]   (h2_{-1} = 0, so no b1 on the seed step)
    #   add_i = [xw_i | b1]  for 1 <= i <= T-1
    #   add_T = [ 0   | b1]  (extra step producing h2_{T-1}; h1 half unused)
    # Then h2_t == s_{t+1}[:, H:].
    b1 = jnp.broadcast_to(params["b1"], (B_pad, H))
    zeros_h = jnp.zeros((B_pad, H), jnp.float32)
    add = jnp.concatenate([
        jnp.concatenate([xw[0], zeros_h], axis=-1)[None],
        jnp.concatenate([xw[1:], jnp.broadcast_to(b1, (T - 1, B_pad, H))], axis=-1),
        jnp.concatenate([zeros_h, b1], axis=-1)[None],
    ], axis=0)                                                        # (T+1, B_pad, 2H)

    # ---- time tiling: keep double-buffered per-block working set modest ----
    T_steps = T + 1
    TT = max(1, min(T_steps, max(8, 4096 // BB)))
    T_pad = _round_up(T_steps, TT)
    if T_pad != T_steps:
        add = jnp.pad(add, ((0, T_pad - T_steps), (0, 0), (0, 0)))

    # ---- block recurrent weight: one (2H, 2H) contraction per step ----
    w = jnp.concatenate([
        jnp.concatenate([params["whh0"], params["wih1"]], axis=1),
        jnp.concatenate([jnp.zeros((H, H), jnp.float32), params["whh1"]], axis=1),
    ], axis=0)                                                        # (2H, 2H)

    hist = pl.pallas_call(
        rnn_kernel,
        out_shape=jax.ShapeDtypeStruct((T_pad, B_pad, H2), jnp.float32),
        grid=(B_pad // BB, T_pad // TT),
        in_specs=[
            pl.BlockSpec((TT, BB, H2), lambda b, t: (t, b, 0)),       # add: batch+time tiled
            pl.BlockSpec((H2, H2), lambda b, t: (0, 0)),              # W: replicated
        ],
        out_specs=pl.BlockSpec((TT, BB, H2), lambda b, t: (t, b, 0)),
        scratch_shapes=[pltpu.VMEM((BB, H2), jnp.float32)],           # carried packed state
        compiler_params=pltpu.CompilerParams(
            dimension_semantics=("parallel", "arbitrary")),
    )(add, w)

    # FC head (Dout=1, lane-sparse) outside the kernel on the h2 half of the packed
    # history; also restores batch-first layout. h2_t == hist[t+1][:, H:].
    h2_hist = hist[1:T + 1, :B, H:]                                   # (T, B, H)
    out = jnp.einsum("tbh,ho->bto", h2_hist, params["wfc"], precision=hp) + params["bfc"]
    return out


def init_params(key, input_dim=1, hidden_dim=64, output_dim=1):
    """Deterministic init matching PyTorch shapes; weights pre-transposed to (in, out)."""
    H = hidden_dim
    ks = jax.random.split(key, 10)
    bound = 1.0 / jnp.sqrt(H)

    def u(k, shape):
        return jax.random.uniform(k, shape, jnp.float32, -bound, bound)

    w_ih0 = u(ks[0], (H, input_dim))
    w_hh0 = u(ks[1], (H, H))
    b_ih0 = u(ks[2], (H,))
    b_hh0 = u(ks[3], (H,))
    w_ih1 = u(ks[4], (H, H))
    w_hh1 = u(ks[5], (H, H))
    b_ih1 = u(ks[6], (H,))
    b_hh1 = u(ks[7], (H,))
    w_fc = u(ks[8], (output_dim, H))
    b_fc = u(ks[9], (output_dim,))

    return {
        "wih0": w_ih0.T,                       # (Din, H)
        "whh0": w_hh0.T,                       # (H, H)
        "b0": (b_ih0 + b_hh0).reshape(1, H),   # (1, H)
        "wih1": w_ih1.T,                       # (H, H)
        "whh1": w_hh1.T,                       # (H, H)
        "b1": (b_ih1 + b_hh1).reshape(1, H),   # (1, H)
        "wfc": w_fc.T,                         # (H, Dout)
        "bfc": b_fc.reshape(1, output_dim),    # (1, Dout)
    }


def reference_forward(x, params):
    """Pure-JAX reference with identical semantics (high-precision matmuls)."""
    B, T, _ = x.shape
    H = params["whh0"].shape[0]
    hp = lax.Precision.HIGHEST
    h1 = jnp.zeros((B, H), jnp.float32)
    h2 = jnp.zeros((B, H), jnp.float32)
    outs = []
    for t in range(T):
        x_t = x[:, t, :]
        h1 = jnp.tanh(jnp.dot(x_t, params["wih0"], precision=hp)
                      + jnp.dot(h1, params["whh0"], precision=hp) + params["b0"])
        h2 = jnp.tanh(jnp.dot(h1, params["wih1"], precision=hp)
                      + jnp.dot(h2, params["whh1"], precision=hp) + params["b1"])
        outs.append(jnp.dot(h2, params["wfc"], precision=hp) + params["bfc"])
    return jnp.stack(outs, axis=1)


if __name__ == "__main__":
    B, T, INPUT_DIM, HIDDEN_DIM, OUTPUT_DIM = 2, 8, 1, 64, 1

    key = jax.random.PRNGKey(0)
    k_x, k_p = jax.random.split(key)
    x = jax.random.normal(k_x, (B, T, INPUT_DIM), jnp.float32)
    params = init_params(k_p, INPUT_DIM, HIDDEN_DIM, OUTPUT_DIM)

    out = rnn_model_forward(x, params)
    out = jax.block_until_ready(out)
    assert out.shape == (B, T, OUTPUT_DIM), out.shape

    ref = reference_forward(x, params)
    max_err = float(jnp.max(jnp.abs(out - ref)))
    assert jnp.allclose(out, ref, atol=2e-3, rtol=2e-3), f"max abs err = {max_err}"

    print("KERNEL_OK")
</pallas_src>

<mosaic_0001>
module attributes {stable_mosaic.version = 11 : i64} {
  func.func @rnn_kernel(%arg0: i32, %arg1: i32, %arg2: memref<9x8x128xf32, #tpu.memory_space<vmem>>, %arg3: memref<128x128xf32, #tpu.memory_space<vmem>>, %arg4: memref<9x8x128xf32, #tpu.memory_space<vmem>>, %arg5: memref<8x128xf32, #tpu.memory_space<vmem>>) attributes {dimension_semantics = [#tpu.dimension_semantics<parallel>, #tpu.dimension_semantics<arbitrary>], iteration_bounds = array<i64: 1, 1>, scalar_prefetch = 0 : i64, scratch_operands = 1 : i64, tpu.core_type = #tpu.core_type<tc>, window_params = [{transform_indices = @transform_0, window_bounds = array<i64: 9, 8, 128>}, {pipeline_mode = #tpu.pipeline_mode<synchronous>, transform_indices = @transform_1, window_bounds = array<i64: 128, 128>}, {transform_indices = @transform_2, window_bounds = array<i64: 9, 8, 128>}]} {
    %c0_i32 = arith.constant 0 : i32
    %0 = arith.cmpi eq, %arg1, %c0_i32 : i32
    %1 = arith.extui %0 : i1 to i32
    %c0_i32_0 = arith.constant 0 : i32
    %2 = arith.cmpi ne, %1, %c0_i32_0 : i32
    scf.if %2 {
      %cst_51 = arith.constant 0.000000e+00 : f32
      %96 = vector.broadcast %cst_51 : f32 to vector<8x128xf32>
      %c0_52 = arith.constant 0 : index
      %c0_53 = arith.constant 0 : index
      %97 = vector.load %arg5[%c0_52, %c0_53] : memref<8x128xf32, #tpu.memory_space<vmem>>, vector<8x128xf32>
      tpu.vector_store %arg5[%c0_52, %c0_53], %96 {strides = array<i32>} : memref<8x128xf32, #tpu.memory_space<vmem>>, vector<8x128xf32>,
    } else {
    }
    %c0 = arith.constant 0 : index
    %c0_1 = arith.constant 0 : index
    %3 = vector.load %arg3[%c0, %c0_1] : memref<128x128xf32, #tpu.memory_space<vmem>>, vector<128x128xf32>
    %c0_2 = arith.constant 0 : index
    %c0_3 = arith.constant 0 : index
    %4 = vector.load %arg5[%c0_2, %c0_3] : memref<8x128xf32, #tpu.memory_space<vmem>>, vector<8x128xf32>
    %c0_i32_4 = arith.constant 0 : i32
    %cst = arith.constant dense<0.000000e+00> : vector<8x128xf32>
    %5 = tpu.matmul %4, %3, %cst {dimension_numbers = #tpu.dot_dimension_numbers<[1], [0], [0], [1], [0, 0, 1, 1], [], []>} : vector<8x128xf32>, vector<128x128xf32>, vector<8x128xf32> -> vector<8x128xf32>
    %6 = arith.index_cast %c0_i32_4 : i32 to index
    %c0_5 = arith.constant 0 : index
    %c0_6 = arith.constant 0 : index
    %7 = vector.load %arg2[%6, %c0_5, %c0_6] : memref<9x8x128xf32, #tpu.memory_space<vmem>>, vector<1x8x128xf32>
    %8 = vector.shape_cast %7 : vector<1x8x128xf32> to vector<8x128xf32>
    %9 = arith.addf %5, %8 : vector<8x128xf32>
    %10 = math.tanh %9 : vector<8x128xf32>
    %11 = arith.index_cast %c0_i32_4 : i32 to index
    %c0_7 = arith.constant 0 : index
    %c0_8 = arith.constant 0 : index
    %12 = vector.load %arg4[%11, %c0_7, %c0_8] : memref<9x8x128xf32, #tpu.memory_space<vmem>>, vector<1x8x128xf32>
    %13 = vector.shape_cast %12 : vector<1x8x128xf32> to vector<8x128xf32>
    %14 = vector.shape_cast %10 : vector<8x128xf32> to vector<1x8x128xf32>
    tpu.vector_store %arg4[%11, %c0_7, %c0_8], %14 {strides = array<i32>} : memref<9x8x128xf32, #tpu.memory_space<vmem>>, vector<1x8x128xf32>,
    %c1_i32 = arith.constant 1 : i32
    %cst_9 = arith.constant dense<0.000000e+00> : vector<8x128xf32>
    %15 = tpu.matmul %10, %3, %cst_9 {dimension_numbers = #tpu.dot_dimension_numbers<[1], [0], [0], [1], [0, 0, 1, 1], [], []>} : vector<8x128xf32>, vector<128x128xf32>, vector<8x128xf32> -> vector<8x128xf32>
    %16 = arith.index_cast %c1_i32 : i32 to index
    %c0_10 = arith.constant 0 : index
    %c0_11 = arith.constant 0 : index
    %17 = vector.load %arg2[%16, %c0_10, %c0_11] : memref<9x8x128xf32, #tpu.memory_space<vmem>>, vector<1x8x128xf32>
    %18 = vector.shape_cast %17 : vector<1x8x128xf32> to vector<8x128xf32>
    %19 = arith.addf %15, %18 : vector<8x128xf32>
    %20 = math.tanh %19 : vector<8x128xf32>
    %21 = arith.index_cast %c1_i32 : i32 to index
    %c0_12 = arith.constant 0 : index
    %c0_13 = arith.constant 0 : index
    %22 = vector.load %arg4[%21, %c0_12, %c0_13] : memref<9x8x128xf32, #tpu.memory_space<vmem>>, vector<1x8x128xf32>
    %23 = vector.shape_cast %22 : vector<1x8x128xf32> to vector<8x128xf32>
    %24 = vector.shape_cast %20 : vector<8x128xf32> to vector<1x8x128xf32>
    tpu.vector_store %arg4[%21, %c0_12, %c0_13], %24 {strides = array<i32>} : memref<9x8x128xf32, #tpu.memory_space<vmem>>, vector<1x8x128xf32>,
    %c2_i32 = arith.constant 2 : i32
    %cst_14 = arith.constant dense<0.000000e+00> : vector<8x128xf32>
    %25 = tpu.matmul %20, %3, %cst_14 {dimension_numbers = #tpu.dot_dimension_numbers<[1], [0], [0], [1], [0, 0, 1, 1], [], []>} : vector<8x128xf32>, vector<128x128xf32>, vector<8x128xf32> -> vector<8x128xf32>
    %26 = arith.index_cast %c2_i32 : i32 to index
    %c0_15 = arith.constant 0 : index
    %c0_16 = arith.constant 0 : index
    %27 = vector.load %arg2[%26, %c0_15, %c0_16] : memref<9x8x128xf32, #tpu.memory_space<vmem>>, vector<1x8x128xf32>
    %28 = vector.shape_cast %27 : vector<1x8x128xf32> to vector<8x128xf32>
    %29 = arith.addf %25, %28 : vector<8x128xf32>
    %30 = math.tanh %29 : vector<8x128xf32>
    %31 = arith.index_cast %c2_i32 : i32 to index
    %c0_17 = arith.constant 0 : index
    %c0_18 = arith.constant 0 : index
    %32 = vector.load %arg4[%31, %c0_17, %c0_18] : memref<9x8x128xf32, #tpu.memory_space<vmem>>, vector<1x8x128xf32>
    %33 = vector.shape_cast %32 : vector<1x8x128xf32> to vector<8x128xf32>
    %34 = vector.shape_cast %30 : vector<8x128xf32> to vector<1x8x128xf32>
    tpu.vector_store %arg4[%31, %c0_17, %c0_18], %34 {strides = array<i32>} : memref<9x8x128xf32, #tpu.memory_space<vmem>>, vector<1x8x128xf32>,
    %c3_i32 = arith.constant 3 : i32
    %cst_19 = arith.constant dense<0.000000e+00> : vector<8x128xf32>
    %35 = tpu.matmul %30, %3, %cst_19 {dimension_numbers = #tpu.dot_dimension_numbers<[1], [0], [0], [1], [0, 0, 1, 1], [], []>} : vector<8x128xf32>, vector<128x128xf32>, vector<8x128xf32> -> vector<8x128xf32>
    %36 = arith.index_cast %c3_i32 : i32 to index
    %c0_20 = arith.constant 0 : index
    %c0_21 = arith.constant 0 : index
    %37 = vector.load %arg2[%36, %c0_20, %c0_21] : memref<9x8x128xf32, #tpu.memory_space<vmem>>, vector<1x8x128xf32>
    %38 = vector.shape_cast %37 : vector<1x8x128xf32> to vector<8x128xf32>
    %39 = arith.addf %35, %38 : vector<8x128xf32>
    %40 = math.tanh %39 : vector<8x128xf32>
    %41 = arith.index_cast %c3_i32 : i32 to index
    %c0_22 = arith.constant 0 : index
    %c0_23 = arith.constant 0 : index
    %42 = vector.load %arg4[%41, %c0_22, %c0_23] : memref<9x8x128xf32, #tpu.memory_space<vmem>>, vector<1x8x128xf32>
    %43 = vector.shape_cast %42 : vector<1x8x128xf32> to vector<8x128xf32>
    %44 = vector.shape_cast %40 : vector<8x128xf32> to vector<1x8x128xf32>
    tpu.vector_store %arg4[%41, %c0_22, %c0_23], %44 {strides = array<i32>} : memref<9x8x128xf32, #tpu.memory_space<vmem>>, vector<1x8x128xf32>,
    %c4_i32 = arith.constant 4 : i32
    %cst_24 = arith.constant dense<0.000000e+00> : vector<8x128xf32>
    %45 = tpu.matmul %40, %3, %cst_24 {dimension_numbers = #tpu.dot_dimension_numbers<[1], [0], [0], [1], [0, 0, 1, 1], [], []>} : vector<8x128xf32>, vector<128x128xf32>, vector<8x128xf32> -> vector<8x128xf32>
    %46 = arith.index_cast %c4_i32 : i32 to index
    %c0_25 = arith.constant 0 : index
    %c0_26 = arith.constant 0 : index
    %47 = vector.load %arg2[%46, %c0_25, %c0_26] : memref<9x8x128xf32, #tpu.memory_space<vmem>>, vector<1x8x128xf32>
    %48 = vector.shape_cast %47 : vector<1x8x128xf32> to vector<8x128xf32>
    %49 = arith.addf %45, %48 : vector<8x128xf32>
    %50 = math.tanh %49 : vector<8x128xf32>
    %51 = arith.index_cast %c4_i32 : i32 to index
    %c0_27 = arith.constant 0 : index
    %c0_28 = arith.constant 0 : index
    %52 = vector.load %arg4[%51, %c0_27, %c0_28] : memref<9x8x128xf32, #tpu.memory_space<vmem>>, vector<1x8x128xf32>
    %53 = vector.shape_cast %52 : vector<1x8x128xf32> to vector<8x128xf32>
    %54 = vector.shape_cast %50 : vector<8x128xf32> to vector<1x8x128xf32>
    tpu.vector_store %arg4[%51, %c0_27, %c0_28], %54 {strides = array<i32>} : memref<9x8x128xf32, #tpu.memory_space<vmem>>, vector<1x8x128xf32>,
    %c5_i32 = arith.constant 5 : i32
    %cst_29 = arith.constant dense<0.000000e+00> : vector<8x128xf32>
    %55 = tpu.matmul %50, %3, %cst_29 {dimension_numbers = #tpu.dot_dimension_numbers<[1], [0], [0], [1], [0, 0, 1, 1], [], []>} : vector<8x128xf32>, vector<128x128xf32>, vector<8x128xf32> -> vector<8x128xf32>
    %56 = arith.index_cast %c5_i32 : i32 to index
    %c0_30 = arith.constant 0 : index
    %c0_31 = arith.constant 0 : index
    %57 = vector.load %arg2[%56, %c0_30, %c0_31] : memref<9x8x128xf32, #tpu.memory_space<vmem>>, vector<1x8x128xf32>
    %58 = vector.shape_cast %57 : vector<1x8x128xf32> to vector<8x128xf32>
    %59 = arith.addf %55, %58 : vector<8x128xf32>
    %60 = math.tanh %59 : vector<8x128xf32>
    %61 = arith.index_cast %c5_i32 : i32 to index
    %c0_32 = arith.constant 0 : index
    %c0_33 = arith.constant 0 : index
    %62 = vector.load %arg4[%61, %c0_32, %c0_33] : memref<9x8x128xf32, #tpu.memory_space<vmem>>, vector<1x8x128xf32>
    %63 = vector.shape_cast %62 : vector<1x8x128xf32> to vector<8x128xf32>
    %64 = vector.shape_cast %60 : vector<8x128xf32> to vector<1x8x128xf32>
    tpu.vector_store %arg4[%61, %c0_32, %c0_33], %64 {strides = array<i32>} : memref<9x8x128xf32, #tpu.memory_space<vmem>>, vector<1x8x128xf32>,
    %c6_i32 = arith.constant 6 : i32
    %cst_34 = arith.constant dense<0.000000e+00> : vector<8x128xf32>
    %65 = tpu.matmul %60, %3, %cst_34 {dimension_numbers = #tpu.dot_dimension_numbers<[1], [0], [0], [1], [0, 0, 1, 1], [], []>} : vector<8x128xf32>, vector<128x128xf32>, vector<8x128xf32> -> vector<8x128xf32>
    %66 = arith.index_cast %c6_i32 : i32 to index
    %c0_35 = arith.constant 0 : index
    %c0_36 = arith.constant 0 : index
    %67 = vector.load %arg2[%66, %c0_35, %c0_36] : memref<9x8x128xf32, #tpu.memory_space<vmem>>, vector<1x8x128xf32>
    %68 = vector.shape_cast %67 : vector<1x8x128xf32> to vector<8x128xf32>
    %69 = arith.addf %65, %68 : vector<8x128xf32>
    %70 = math.tanh %69 : vector<8x128xf32>
    %71 = arith.index_cast %c6_i32 : i32 to index
    %c0_37 = arith.constant 0 : index
    %c0_38 = arith.constant 0 : index
    %72 = vector.load %arg4[%71, %c0_37, %c0_38] : memref<9x8x128xf32, #tpu.memory_space<vmem>>, vector<1x8x128xf32>
    %73 = vector.shape_cast %72 : vector<1x8x128xf32> to vector<8x128xf32>
    %74 = vector.shape_cast %70 : vector<8x128xf32> to vector<1x8x128xf32>
    tpu.vector_store %arg4[%71, %c0_37, %c0_38], %74 {strides = array<i32>} : memref<9x8x128xf32, #tpu.memory_space<vmem>>, vector<1x8x128xf32>,
    %c7_i32 = arith.constant 7 : i32
    %cst_39 = arith.constant dense<0.000000e+00> : vector<8x128xf32>
    %75 = tpu.matmul %70, %3, %cst_39 {dimension_numbers = #tpu.dot_dimension_numbers<[1], [0], [0], [1], [0, 0, 1, 1], [], []>} : vector<8x128xf32>, vector<128x128xf32>, vector<8x128xf32> -> vector<8x128xf32>
    %76 = arith.index_cast %c7_i32 : i32 to index
    %c0_40 = arith.constant 0 : index
    %c0_41 = arith.constant 0 : index
    %77 = vector.load %arg2[%76, %c0_40, %c0_41] : memref<9x8x128xf32, #tpu.memory_space<vmem>>, vector<1x8x128xf32>
    %78 = vector.shape_cast %77 : vector<1x8x128xf32> to vector<8x128xf32>
    %79 = arith.addf %75, %78 : vector<8x128xf32>
    %80 = math.tanh %79 : vector<8x128xf32>
    %81 = arith.index_cast %c7_i32 : i32 to index
    %c0_42 = arith.constant 0 : index
    %c0_43 = arith.constant 0 : index
    %82 = vector.load %arg4[%81, %c0_42, %c0_43] : memref<9x8x128xf32, #tpu.memory_space<vmem>>, vector<1x8x128xf32>
    %83 = vector.shape_cast %82 : vector<1x8x128xf32> to vector<8x128xf32>
    %84 = vector.shape_cast %80 : vector<8x128xf32> to vector<1x8x128xf32>
    tpu.vector_store %arg4[%81, %c0_42, %c0_43], %84 {strides = array<i32>} : memref<9x8x128xf32, #tpu.memory_space<vmem>>, vector<1x8x128xf32>,
    %c8_i32 = arith.constant 8 : i32
    %cst_44 = arith.constant dense<0.000000e+00> : vector<8x128xf32>
    %85 = tpu.matmul %80, %3, %cst_44 {dimension_numbers = #tpu.dot_dimension_numbers<[1], [0], [0], [1], [0, 0, 1, 1], [], []>} : vector<8x128xf32>, vector<128x128xf32>, vector<8x128xf32> -> vector<8x128xf32>
    %86 = arith.index_cast %c8_i32 : i32 to index
    %c0_45 = arith.constant 0 : index
    %c0_46 = arith.constant 0 : index
    %87 = vector.load %arg2[%86, %c0_45, %c0_46] : memref<9x8x128xf32, #tpu.memory_space<vmem>>, vector<1x8x128xf32>
    %88 = vector.shape_cast %87 : vector<1x8x128xf32> to vector<8x128xf32>
    %89 = arith.addf %85, %88 : vector<8x128xf32>
    %90 = math.tanh %89 : vector<8x128xf32>
    %91 = arith.index_cast %c8_i32 : i32 to index
    %c0_47 = arith.constant 0 : index
    %c0_48 = arith.constant 0 : index
    %92 = vector.load %arg4[%91, %c0_47, %c0_48] : memref<9x8x128xf32, #tpu.memory_space<vmem>>, vector<1x8x128xf32>
    %93 = vector.shape_cast %92 : vector<1x8x128xf32> to vector<8x128xf32>
    %94 = vector.shape_cast %90 : vector<8x128xf32> to vector<1x8x128xf32>
    tpu.vector_store %arg4[%91, %c0_47, %c0_48], %94 {strides = array<i32>} : memref<9x8x128xf32, #tpu.memory_space<vmem>>, vector<1x8x128xf32>,
    %c9_i32 = arith.constant 9 : i32
    %c0_49 = arith.constant 0 : index
    %c0_50 = arith.constant 0 : index
    %95 = vector.load %arg5[%c0_49, %c0_50] : memref<8x128xf32, #tpu.memory_space<vmem>>, vector<8x128xf32>
    tpu.vector_store %arg5[%c0_49, %c0_50], %90 {strides = array<i32>} : memref<8x128xf32, #tpu.memory_space<vmem>>, vector<8x128xf32>,
    return
  }
  func.func @transform_0(%arg0: i32, %arg1: i32) -> (i32, i32, i32) {
    %c0_i32 = arith.constant 0 : i32
    %c0_i32_0 = arith.constant 0 : i32
    return %arg1, %arg0, %c0_i32 : i32, i32, i32
  }
  func.func @transform_1(%arg0: i32, %arg1: i32) -> (i32, i32) {
    %c0_i32 = arith.constant 0 : i32
    %c0_i32_0 = arith.constant 0 : i32
    %c0_i32_1 = arith.constant 0 : i32
    return %c0_i32, %c0_i32_0 : i32, i32
  }
  func.func @transform_2(%arg0: i32, %arg1: i32) -> (i32, i32, i32) {
    %c0_i32 = arith.constant 0 : i32
    %c0_i32_0 = arith.constant 0 : i32
    return %arg1, %arg0, %c0_i32 : i32, i32, i32
  }
}

</mosaic_0001>

<llo_original>
// kernel: tpu_custom_call.1
$region0: #{tpu_custom_call.1}
  #allocation0 [shape = 'u32[]', space=smem, size = 0x4, offset = 0x4, fixed_abs, tag = 'smem constant byte address 0x4 - core index']
  #allocation1 [shape = 'u32[144,128]{1,0:T(1,128)}', space=vmem, size = 0x12000, scoped, tag = 'internal scratch']
  #allocation2 [shape = 'f32[8,128]{1,0:T(8,128)}', space=vmem, size = 0x1000, scoped, tag = 'scratch operand']
  %s0 = inlined_call_operand.hbm [shape: f32[9,8,128], index: 0, kind: input, shape index: {}]
  %s1 = inlined_call_operand.hbm [shape: f32[128,128], index: 1, kind: input, shape index: {}]
  %s2 = inlined_call_operand.hbm [shape: f32[9,8,128], index: 2, kind: output, shape index: {}]
  %s3 = sld [smem:[#allocation0]]
  $region30: #{tpu_custom_call.1} parent=0
    _
  %s5 = ssub.s32 1, %s3
  %s6 = scalar_select 0, %s5, %s3
  $region1: #{tpu_custom_call.1} parent=0
    #allocation3 [shape = 'u8[36864]{0}', space=vmem, size = 0x9000, scoped, tag = 'input window, operand 0, single buffered']
    #allocation4 [shape = 's32[1]{0}', space=sflag, size = 0x4, scoped, tag = 'scoped memory for tpu_custom_call.1']
    #allocation5 [shape = 's32[1]{0}', space=sflag, size = 0x4, scoped, tag = 'scoped memory for tpu_custom_call.1']
    #allocation6 [shape = 'u8[65536]{0}', space=vmem, size = 0x10000, scoped, tag = 'input window, operand 1, single buffered']
    #allocation7 [shape = 's32[1]{0}', space=sflag, size = 0x4, scoped, tag = 'scoped memory for tpu_custom_call.1']
    #allocation8 [shape = 'u8[36864]{0}', space=vmem, size = 0x9000, scoped, tag = 'output window, operand 0, single buffered']
    %7 = vsyncpa [#allocation4], 0
    %8 = vsyncpa [#allocation7], 0
    %9 = vsyncpa [#allocation5], 0
    // Predicated region
    $region2: #{tpu_custom_call.1} parent=1 // pred_check
      _
    $region3: #{tpu_custom_call.1} parent=1 // pred_check_branch
      %11 = sbr.rel (0) target = $region5
    $region4: #{tpu_custom_call.1} parent=1 // pred_region
      %s13 = ssub.s32 1152, 1152
      %14 = vsyncadd [#allocation4], %s13
      %s15 = sshll.u32 [#allocation3], 4
      %s16 = int_to_ptr.vmem [resolvable:$true] %s15
      %21 = dma.hbm_to_vmem [thread:$0]  %s0, 1152, %s16, [#allocation4], 128, 128, 8
    $region5: #{tpu_custom_call.1} parent=1 // pred_fallthru
      _
    // Predicated region
    $region6: #{tpu_custom_call.1} parent=1 // pred_check
      _
    $region7: #{tpu_custom_call.1} parent=1 // pred_check_branch
      %23 = sbr.rel (0) target = $region9
    $region8: #{tpu_custom_call.1} parent=1 // pred_region
      %s25 = ssub.s32 2048, 2048
      %26 = vsyncadd [#allocation7], %s25
      %s27 = sshll.u32 [#allocation6], 4
      %s28 = int_to_ptr.vmem [resolvable:$true] %s27
      %33 = dma.hbm_to_vmem [thread:$0]  %s1, 2048, %s28, [#allocation7], 128, 128, 8
    $region9: #{tpu_custom_call.1} parent=1 // pred_fallthru
      _
    // Predicated region
    $region10: #{tpu_custom_call.1} parent=1 // pred_check
      _
    $region11: #{tpu_custom_call.1} parent=1 // pred_check_branch
      %35 = sbr.rel (0) target = $region13
    $region12: #{tpu_custom_call.1} parent=1 // pred_region
      %36 = dma.done [#allocation4], 1152
    $region13: #{tpu_custom_call.1} parent=1 // pred_fallthru
      _
    // Predicated region
    $region14: #{tpu_custom_call.1} parent=1 // pred_check
      _
    $region15: #{tpu_custom_call.1} parent=1 // pred_check_branch
      %38 = sbr.rel (0) target = $region17
    $region16: #{tpu_custom_call.1} parent=1 // pred_region
      %39 = dma.done [#allocation7], 2048
    $region17: #{tpu_custom_call.1} parent=1 // pred_fallthru
      _
    %p40 = scmp.eq.s32.totalorder 0, 0
    // Predicated region
    $region18: #{tpu_custom_call.1} parent=1 // pred_check
      %p41 = pneg %p40
    $region19: #{tpu_custom_call.1} parent=1 // pred_check_branch
      %43 = sbr.rel (%p41) target = $region21
    $region20: #{tpu_custom_call.1} parent=1 // pred_region
      %44 = vst [vmem:[#allocation2] sm:$0xff] 0.0
    $region21: #{tpu_custom_call.1} parent=1 // pred_fallthru
      _
    %v45 = vld [vmem:[#allocation6] sm:$0xff]
    %v46 = vld [vmem:[#allocation6 + $0x8] sm:$0xff]
    %v47 = vld [vmem:[#allocation6 + $0x10] sm:$0xff]
    %v48 = vld [vmem:[#allocation6 + $0x18] sm:$0xff]
    %v49 = vld [vmem:[#allocation6 + $0x20] sm:$0xff]
    %v50 = vld [vmem:[#allocation6 + $0x28] sm:$0xff]
    %v51 = vld [vmem:[#allocation6 + $0x30] sm:$0xff]
    %v52 = vld [vmem:[#allocation6 + $0x38] sm:$0xff]
    %v53 = vld [vmem:[#allocation6 + $0x40] sm:$0xff]
    %v54 = vld [vmem:[#allocation6 + $0x48] sm:$0xff]
    %v55 = vld [vmem:[#allocation6 + $0x50] sm:$0xff]
    %v56 = vld [vmem:[#allocation6 + $0x58] sm:$0xff]
    %v57 = vld [vmem:[#allocation6 + $0x60] sm:$0xff]
    %v58 = vld [vmem:[#allocation6 + $0x68] sm:$0xff]
    %v59 = vld [vmem:[#allocation6 + $0x70] sm:$0xff]
    %v60 = vld [vmem:[#allocation6 + $0x78] sm:$0xff]
    %v61 = vld [vmem:[#allocation2] sm:$0xff]
    %v62 = vld [vmem:[#allocation3] sm:$0xff]
    %63 = vmatprep.subr.mxu0 0.0
    %64 = vmatpush1.msra.mxu0 %v60
    %65 = vmatprep.subr.mxu0 0.0
    %66 = vmatpush1.msra.mxu0 %v59
    %67 = vmatprep.subr.mxu0 0.0
    %68 = vmatpush1.msra.mxu0 %v58
    %69 = vmatprep.subr.mxu0 0.0
    %70 = vmatpush1.msra.mxu0 %v57
    %71 = vmatprep.subr.mxu0 0.0
    %72 = vmatpush1.msra.mxu0 %v56
    %73 = vmatprep.subr.mxu0 0.0
    %74 = vmatpush1.msra.mxu0 %v55
    %75 = vmatprep.subr.mxu0 0.0
    %76 = vmatpush1.msra.mxu0 %v54
    %77 = vmatprep.subr.mxu0 0.0
    %78 = vmatpush1.msra.mxu0 %v53
    %79 = vmatprep.subr.mxu0 0.0
    %80 = vmatpush1.msra.mxu0 %v52
    %81 = vmatprep.subr.mxu0 0.0
    %82 = vmatpush1.msra.mxu0 %v51
    %83 = vmatprep.subr.mxu0 0.0
    %84 = vmatpush1.msra.mxu0 %v50
    %85 = vmatprep.subr.mxu0 0.0
    %86 = vmatpush1.msra.mxu0 %v49
    %87 = vmatprep.subr.mxu0 0.0
    %88 = vmatpush1.msra.mxu0 %v48
    %89 = vmatprep.subr.mxu0 0.0
    %90 = vmatpush1.msra.mxu0 %v47
    %91 = vmatprep.subr.mxu0 0.0
    %92 = vmatpush1.msra.mxu0 %v46
    %93 = vmatprep.subr.mxu0 0.0
    %94 = vmatpush1.msra.mxu0 %v45
    %95 = vmatprep.subr.mxu0 0.0
    %96 = vmatpush2.msra.mxu0 0.0
    %97 = vmatprep.subr.mxu0 0.0
    %98 = vmatpush2.msra.mxu0 0.0
    %99 = vmatprep.subr.mxu0 0.0
    %100 = vmatpush2.msra.mxu0 0.0
    %101 = vmatprep.subr.mxu0 0.0
    %102 = vmatpush2.msra.mxu0 0.0
    %103 = vmatprep.subr.mxu0 0.0
    %104 = vmatpush2.msra.mxu0 0.0
    %105 = vmatprep.subr.mxu0 0.0
    %106 = vmatpush2.msra.mxu0 0.0
    %107 = vmatprep.subr.mxu0 0.0
    %108 = vmatpush2.msra.mxu0 0.0
    %109 = vmatprep.subr.mxu0 0.0
    %110 = vmatpush2.msra.mxu0 0.0
    %111 = vmatprep.subr.mxu0 0.0
    %112 = vmatpush2.msra.mxu0 0.0
    %113 = vmatprep.subr.mxu0 0.0
    %114 = vmatpush2.msra.mxu0 0.0
    %115 = vmatprep.subr.mxu0 0.0
    %116 = vmatpush2.msra.mxu0 0.0
    %117 = vmatprep.subr.mxu0 0.0
    %118 = vmatpush2.msra.mxu0 0.0
    %119 = vmatprep.subr.mxu0 0.0
    %120 = vmatpush2.msra.mxu0 0.0
    %121 = vmatprep.subr.mxu0 0.0
    %122 = vmatpush2.msra.mxu0 0.0
    %123 = vmatprep.subr.mxu0 0.0
    %124 = vmatpush2.msra.mxu0 0.0
    %125 = vmatprep.subr.mxu0 0.0
    %126 = vmatpush2.msra.mxu0 0.0
    %127 = vmatprep.mubr.f32.mxu0 0.0
    %128 = vmatmul.mubr.f32.gmra.mxu0 %v61
    %v129 = vpop.f32.mrf.mxu0
    %v130 = vadd.f32 %v62, %v129
    %v131 = vpop.f32.mrf.mxu0
    %132 = vdwg.mxu0
    %v133 = vtanh.pop %v130
    %134 = vst [vmem:[#allocation8] sm:$0xff] %v133
    %s135 = scalar_lea.vmem [#allocation3], 8
    %v136 = vld [vmem:[%s135] sm:$0xff]
    %137 = vmatprep.subr.mxu0 0.0
    %138 = vmatpush1.msra.mxu0 %v60
    %139 = vmatprep.subr.mxu0 0.0
    %140 = vmatpush1.msra.mxu0 %v59
    %141 = vmatprep.subr.mxu0 0.0
    %142 = vmatpush1.msra.mxu0 %v58
    %143 = vmatprep.subr.mxu0 0.0
    %144 = vmatpush1.msra.mxu0 %v57
    %145 = vmatprep.subr.mxu0 0.0
    %146 = vmatpush1.msra.mxu0 %v56
    %147 = vmatprep.subr.mxu0 0.0
    %148 = vmatpush1.msra.mxu0 %v55
    %149 = vmatprep.subr.mxu0 0.0
    %150 = vmatpush1.msra.mxu0 %v54
    %151 = vmatprep.subr.mxu0 0.0
    %152 = vmatpush1.msra.mxu0 %v53
    %153 = vmatprep.subr.mxu0 0.0
    %154 = vmatpush1.msra.mxu0 %v52
    %155 = vmatprep.subr.mxu0 0.0
    %156 = vmatpush1.msra.mxu0 %v51
    %157 = vmatprep.subr.mxu0 0.0
    %158 = vmatpush1.msra.mxu0 %v50
    %159 = vmatprep.subr.mxu0 0.0
    %160 = vmatpush1.msra.mxu0 %v49
    %161 = vmatprep.subr.mxu0 0.0
    %162 = vmatpush1.msra.mxu0 %v48
    %163 = vmatprep.subr.mxu0 0.0
    %164 = vmatpush1.msra.mxu0 %v47
    %165 = vmatprep.subr.mxu0 0.0
    %166 = vmatpush1.msra.mxu0 %v46
    %167 = vmatprep.subr.mxu0 0.0
    %168 = vmatpush1.msra.mxu0 %v45
    %169 = vmatprep.subr.mxu0 0.0
    %170 = vmatpush2.msra.mxu0 0.0
    %171 = vmatprep.subr.mxu0 0.0
    %172 = vmatpush2.msra.mxu0 0.0
    %173 = vmatprep.subr.mxu0 0.0
    %174 = vmatpush2.msra.mxu0 0.0
    %175 = vmatprep.subr.mxu0 0.0
    %176 = vmatpush2.msra.mxu0 0.0
    %177 = vmatprep.subr.mxu0 0.0
    %178 = vmatpush2.msra.mxu0 0.0
    %179 = vmatprep.subr.mxu0 0.0
    %180 = vmatpush2.msra.mxu0 0.0
    %181 = vmatprep.subr.mxu0 0.0
    %182 = vmatpush2.msra.mxu0 0.0
    %183 = vmatprep.subr.mxu0 0.0
    %184 = vmatpush2.msra.mxu0 0.0
    %185 = vmatprep.subr.mxu0 0.0
    %186 = vmatpush2.msra.mxu0 0.0
    %187 = vmatprep.subr.mxu0 0.0
    %188 = vmatpush2.msra.mxu0 0.0
    %189 = vmatprep.subr.mxu0 0.0
    %190 = vmatpush2.msra.mxu0 0.0
    %191 = vmatprep.subr.mxu0 0.0
    %192 = vmatpush2.msra.mxu0 0.0
    %193 = vmatprep.subr.mxu0 0.0
    %194 = vmatpush2.msra.mxu0 0.0
    %195 = vmatprep.subr.mxu0 0.0
    %196 = vmatpush2.msra.mxu0 0.0
    %197 = vmatprep.subr.mxu0 0.0
    %198 = vmatpush2.msra.mxu0 0.0
    %199 = vmatprep.subr.mxu0 0.0
    %200 = vmatpush2.msra.mxu0 0.0
    %201 = vmatprep.mubr.f32.mxu0 0.0
    %202 = vmatmul.mubr.f32.gmra.mxu0 %v133
    %v203 = vpop.f32.mrf.mxu0
    %v204 = vadd.f32 %v136, %v203
    %v205 = vpop.f32.mrf.mxu0
    %206 = vdwg.mxu0
    %v207 = vtanh.pop %v204
    %s208 = scalar_lea.vmem [#allocation8], 8
    %209 = vst [vmem:[%s208] sm:$0xff] %v207
    %s210 = scalar_lea.vmem [#allocation3], 16
    %v211 = vld [vmem:[%s210] sm:$0xff]
    %212 = vmatprep.subr.mxu0 0.0
    %213 = vmatpush1.msra.mxu0 %v60
    %214 = vmatprep.subr.mxu0 0.0
    %215 = vmatpush1.msra.mxu0 %v59
    %216 = vmatprep.subr.mxu0 0.0
    %217 = vmatpush1.msra.mxu0 %v58
    %218 = vmatprep.subr.mxu0 0.0
    %219 = vmatpush1.msra.mxu0 %v57
    %220 = vmatprep.subr.mxu0 0.0
    %221 = vmatpush1.msra.mxu0 %v56
    %222 = vmatprep.subr.mxu0 0.0
    %223 = vmatpush1.msra.mxu0 %v55
    %224 = vmatprep.subr.mxu0 0.0
    %225 = vmatpush1.msra.mxu0 %v54
    %226 = vmatprep.subr.mxu0 0.0
    %227 = vmatpush1.msra.mxu0 %v53
    %228 = vmatprep.subr.mxu0 0.0
    %229 = vmatpush1.msra.mxu0 %v52
    %230 = vmatprep.subr.mxu0 0.0
    %231 = vmatpush1.msra.mxu0 %v51
    %232 = vmatprep.subr.mxu0 0.0
    %233 = vmatpush1.msra.mxu0 %v50
    %234 = vmatprep.subr.mxu0 0.0
    %235 = vmatpush1.msra.mxu0 %v49
    %236 = vmatprep.subr.mxu0 0.0
    %237 = vmatpush1.msra.mxu0 %v48
    %238 = vmatprep.subr.mxu0 0.0
    %239 = vmatpush1.msra.mxu0 %v47
    %240 = vmatprep.subr.mxu0 0.0
    %241 = vmatpush1.msra.mxu0 %v46
    %242 = vmatprep.subr.mxu0 0.0
    %243 = vmatpush1.msra.mxu0 %v45
    %244 = vmatprep.subr.mxu0 0.0
    %245 = vmatpush2.msra.mxu0 0.0
    %246 = vmatprep.subr.mxu0 0.0
    %247 = vmatpush2.msra.mxu0 0.0
    %248 = vmatprep.subr.mxu0 0.0
    %249 = vmatpush2.msra.mxu0 0.0
    %250 = vmatprep.subr.mxu0 0.0
    %251 = vmatpush2.msra.mxu0 0.0
    %252 = vmatprep.subr.mxu0 0.0
    %253 = vmatpush2.msra.mxu0 0.0
    %254 = vmatprep.subr.mxu0 0.0
    %255 = vmatpush2.msra.mxu0 0.0
    %256 = vmatprep.subr.mxu0 0.0
    %257 = vmatpush2.msra.mxu0 0.0
    %258 = vmatprep.subr.mxu0 0.0
    %259 = vmatpush2.msra.mxu0 0.0
    %260 = vmatprep.subr.mxu0 0.0
    %261 = vmatpush2.msra.mxu0 0.0
    %262 = vmatprep.subr.mxu0 0.0
    %263 = vmatpush2.msra.mxu0 0.0
    %264 = vmatprep.subr.mxu0 0.0
    %265 = vmatpush2.msra.mxu0 0.0
    %266 = vmatprep.subr.mxu0 0.0
    %267 = vmatpush2.msra.mxu0 0.0
    %268 = vmatprep.subr.mxu0 0.0
    %269 = vmatpush2.msra.mxu0 0.0
    %270 = vmatprep.subr.mxu0 0.0
    %271 = vmatpush2.msra.mxu0 0.0
    %272 = vmatprep.subr.mxu0 0.0
    %273 = vmatpush2.msra.mxu0 0.0
    %274 = vmatprep.subr.mxu0 0.0
    %275 = vmatpush2.msra.mxu0 0.0
    %276 = vmatprep.mubr.f32.mxu0 0.0
    %277 = vmatmul.mubr.f32.gmra.mxu0 %v207
    %v278 = vpop.f32.mrf.mxu0
    %v279 = vadd.f32 %v211, %v278
    %v280 = vpop.f32.mrf.mxu0
    %281 = vdwg.mxu0
    %v282 = vtanh.pop %v279
    %s283 = scalar_lea.vmem [#allocation8], 16
    %284 = vst [vmem:[%s283] sm:$0xff] %v282
    %s285 = scalar_lea.vmem [#allocation3], 24
    %v286 = vld [vmem:[%s285] sm:$0xff]
    %287 = vmatprep.subr.mxu0 0.0
    %288 = vmatpush1.msra.mxu0 %v60
    %289 = vmatprep.subr.mxu0 0.0
    %290 = vmatpush1.msra.mxu0 %v59
    %291 = vmatprep.subr.mxu0 0.0
    %292 = vmatpush1.msra.mxu0 %v58
    %293 = vmatprep.subr.mxu0 0.0
    %294 = vmatpush1.msra.mxu0 %v57
    %295 = vmatprep.subr.mxu0 0.0
    %296 = vmatpush1.msra.mxu0 %v56
    %297 = vmatprep.subr.mxu0 0.0
    %298 = vmatpush1.msra.mxu0 %v55
    %299 = vmatprep.subr.mxu0 0.0
    %300 = vmatpush1.msra.mxu0 %v54
    %301 = vmatprep.subr.mxu0 0.0
    %302 = vmatpush1.msra.mxu0 %v53
    %303 = vmatprep.subr.mxu0 0.0
    %304 = vmatpush1.msra.mxu0 %v52
    %305 = vmatprep.subr.mxu0 0.0
    %306 = vmatpush1.msra.mxu0 %v51
    %307 = vmatprep.subr.mxu0 0.0
    %308 = vmatpush1.msra.mxu0 %v50
    %309 = vmatprep.subr.mxu0 0.0
    %310 = vmatpush1.msra.mxu0 %v49
    %311 = vmatprep.subr.mxu0 0.0
    %312 = vmatpush1.msra.mxu0 %v48
    %313 = vmatprep.subr.mxu0 0.0
    %314 = vmatpush1.msra.mxu0 %v47
    %315 = vmatprep.subr.mxu0 0.0
    %316 = vmatpush1.msra.mxu0 %v46
    %317 = vmatprep.subr.mxu0 0.0
    %318 = vmatpush1.msra.mxu0 %v45
    %319 = vmatprep.subr.mxu0 0.0
    %320 = vmatpush2.msra.mxu0 0.0
    %321 = vmatprep.subr.mxu0 0.0
    %322 = vmatpush2.msra.mxu0 0.0
    %323 = vmatprep.subr.mxu0 0.0
    %324 = vmatpush2.msra.mxu0 0.0
    %325 = vmatprep.subr.mxu0 0.0
    %326 = vmatpush2.msra.mxu0 0.0
    %327 = vmatprep.subr.mxu0 0.0
    %328 = vmatpush2.msra.mxu0 0.0
    %329 = vmatprep.subr.mxu0 0.0
    %330 = vmatpush2.msra.mxu0 0.0
    %331 = vmatprep.subr.mxu0 0.0
    %332 = vmatpush2.msra.mxu0 0.0
    %333 = vmatprep.subr.mxu0 0.0
    %334 = vmatpush2.msra.mxu0 0.0
    %335 = vmatprep.subr.mxu0 0.0
    %336 = vmatpush2.msra.mxu0 0.0
    %337 = vmatprep.subr.mxu0 0.0
    %338 = vmatpush2.msra.mxu0 0.0
    %339 = vmatprep.subr.mxu0 0.0
    %340 = vmatpush2.msra.mxu0 0.0
    %341 = vmatprep.subr.mxu0 0.0
    %342 = vmatpush2.msra.mxu0 0.0
    %343 = vmatprep.subr.mxu0 0.0
    %344 = vmatpush2.msra.mxu0 0.0
    %345 = vmatprep.subr.mxu0 0.0
    %346 = vmatpush2.msra.mxu0 0.0
    %347 = vmatprep.subr.mxu0 0.0
    %348 = vmatpush2.msra.mxu0 0.0
    %349 = vmatprep.subr.mxu0 0.0
    %350 = vmatpush2.msra.mxu0 0.0
    %351 = vmatprep.mubr.f32.mxu0 0.0
    %352 = vmatmul.mubr.f32.gmra.mxu0 %v282
    %v353 = vpop.f32.mrf.mxu0
    %v354 = vadd.f32 %v286, %v353
    %v355 = vpop.f32.mrf.mxu0
    %356 = vdwg.mxu0
    %v357 = vtanh.pop %v354
    %s358 = scalar_lea.vmem [#allocation8], 24
    %359 = vst [vmem:[%s358] sm:$0xff] %v357
    %s360 = scalar_lea.vmem [#allocation3], 32
    %v361 = vld [vmem:[%s360] sm:$0xff]
    %362 = vmatprep.subr.mxu0 0.0
    %363 = vmatpush1.msra.mxu0 %v60
    %364 = vmatprep.subr.mxu0 0.0
    %365 = vmatpush1.msra.mxu0 %v59
    %366 = vmatprep.subr.mxu0 0.0
    %367 = vmatpush1.msra.mxu0 %v58
    %368 = vmatprep.subr.mxu0 0.0
    %369 = vmatpush1.msra.mxu0 %v57
    %370 = vmatprep.subr.mxu0 0.0
    %371 = vmatpush1.msra.mxu0 %v56
    %372 = vmatprep.subr.mxu0 0.0
    %373 = vmatpush1.msra.mxu0 %v55
    %374 = vmatprep.subr.mxu0 0.0
    %375 = vmatpush1.msra.mxu0 %v54
    %376 = vmatprep.subr.mxu0 0.0
    %377 = vmatpush1.msra.mxu0 %v53
    %378 = vmatprep.subr.mxu0 0.0
    %379 = vmatpush1.msra.mxu0 %v52
    %380 = vmatprep.subr.mxu0 0.0
    %381 = vmatpush1.msra.mxu0 %v51
    %382 = vmatprep.subr.mxu0 0.0
    %383 = vmatpush1.msra.mxu0 %v50
    %384 = vmatprep.subr.mxu0 0.0
    %385 = vmatpush1.msra.mxu0 %v49
    %386 = vmatprep.subr.mxu0 0.0
    %387 = vmatpush1.msra.mxu0 %v48
    %388 = vmatprep.subr.mxu0 0.0
    %389 = vmatpush1.msra.mxu0 %v47
    %390 = vmatprep.subr.mxu0 0.0
    %391 = vmatpush1.msra.mxu0 %v46
    %392 = vmatprep.subr.mxu0 0.0
    %393 = vmatpush1.msra.mxu0 %v45
    %394 = vmatprep.subr.mxu0 0.0
    %395 = vmatpush2.msra.mxu0 0.0
    %396 = vmatprep.subr.mxu0 0.0
    %397 = vmatpush2.msra.mxu0 0.0
    %398 = vmatprep.subr.mxu0 0.0
    %399 = vmatpush2.msra.mxu0 0.0
    %400 = vmatprep.subr.mxu0 0.0
    %401 = vmatpush2.msra.mxu0 0.0
    %402 = vmatprep.subr.mxu0 0.0
    %403 = vmatpush2.msra.mxu0 0.0
    %404 = vmatprep.subr.mxu0 0.0
    %405 = vmatpush2.msra.mxu0 0.0
    %406 = vmatprep.subr.mxu0 0.0
    %407 = vmatpush2.msra.mxu0 0.0
    %408 = vmatprep.subr.mxu0 0.0
    %409 = vmatpush2.msra.mxu0 0.0
    %410 = vmatprep.subr.mxu0 0.0
    %411 = vmatpush2.msra.mxu0 0.0
    %412 = vmatprep.subr.mxu0 0.0
    %413 = vmatpush2.msra.mxu0 0.0
    %414 = vmatprep.subr.mxu0 0.0
    %415 = vmatpush2.msra.mxu0 0.0
    %416 = vmatprep.subr.mxu0 0.0
    %417 = vmatpush2.msra.mxu0 0.0
    %418 = vmatprep.subr.mxu0 0.0
    %419 = vmatpush2.msra.mxu0 0.0
    %420 = vmatprep.subr.mxu0 0.0
    %421 = vmatpush2.msra.mxu0 0.0
    %422 = vmatprep.subr.mxu0 0.0
    %423 = vmatpush2.msra.mxu0 0.0
    %424 = vmatprep.subr.mxu0 0.0
    %425 = vmatpush2.msra.mxu0 0.0
    %426 = vmatprep.mubr.f32.mxu0 0.0
    %427 = vmatmul.mubr.f32.gmra.mxu0 %v357
    %v428 = vpop.f32.mrf.mxu0
    %v429 = vadd.f32 %v361, %v428
    %v430 = vpop.f32.mrf.mxu0
    %431 = vdwg.mxu0
    %v432 = vtanh.pop %v429
    %s433 = scalar_lea.vmem [#allocation8], 32
    %434 = vst [vmem:[%s433] sm:$0xff] %v432
    %s435 = scalar_lea.vmem [#allocation3], 40
    %v436 = vld [vmem:[%s435] sm:$0xff]
    %437 = vmatprep.subr.mxu0 0.0
    %438 = vmatpush1.msra.mxu0 %v60
    %439 = vmatprep.subr.mxu0 0.0
    %440 = vmatpush1.msra.mxu0 %v59
    %441 = vmatprep.subr.mxu0 0.0
    %442 = vmatpush1.msra.mxu0 %v58
    %443 = vmatprep.subr.mxu0 0.0
    %444 = vmatpush1.msra.mxu0 %v57
    %445 = vmatprep.subr.mxu0 0.0
    %446 = vmatpush1.msra.mxu0 %v56
    %447 = vmatprep.subr.mxu0 0.0
    %448 = vmatpush1.msra.mxu0 %v55
    %449 = vmatprep.subr.mxu0 0.0
    %450 = vmatpush1.msra.mxu0 %v54
    %451 = vmatprep.subr.mxu0 0.0
    %452 = vmatpush1.msra.mxu0 %v53
    %453 = vmatprep.subr.mxu0 0.0
    %454 = vmatpush1.msra.mxu0 %v52
    %455 = vmatprep.subr.mxu0 0.0
    %456 = vmatpush1.msra.mxu0 %v51
    %457 = vmatprep.subr.mxu0 0.0
    %458 = vmatpush1.msra.mxu0 %v50
    %459 = vmatprep.subr.mxu0 0.0
    %460 = vmatpush1.msra.mxu0 %v49
    %461 = vmatprep.subr.mxu0 0.0
    %462 = vmatpush1.msra.mxu0 %v48
    %463 = vmatprep.subr.mxu0 0.0
    %464 = vmatpush1.msra.mxu0 %v47
    %465 = vmatprep.subr.mxu0 0.0
    %466 = vmatpush1.msra.mxu0 %v46
    %467 = vmatprep.subr.mxu0 0.0
    %468 = vmatpush1.msra.mxu0 %v45
    %469 = vmatprep.subr.mxu0 0.0
    %470 = vmatpush2.msra.mxu0 0.0
    %471 = vmatprep.subr.mxu0 0.0
    %472 = vmatpush2.msra.mxu0 0.0
    %473 = vmatprep.subr.mxu0 0.0
    %474 = vmatpush2.msra.mxu0 0.0
    %475 = vmatprep.subr.mxu0 0.0
    %476 = vmatpush2.msra.mxu0 0.0
    %477 = vmatprep.subr.mxu0 0.0
    %478 = vmatpush2.msra.mxu0 0.0
    %479 = vmatprep.subr.mxu0 0.0
    %480 = vmatpush2.msra.mxu0 0.0
    %481 = vmatprep.subr.mxu0 0.0
    %482 = vmatpush2.msra.mxu0 0.0
    %483 = vmatprep.subr.mxu0 0.0
    %484 = vmatpush2.msra.mxu0 0.0
    %485 = vmatprep.subr.mxu0 0.0
    %486 = vmatpush2.msra.mxu0 0.0
    %487 = vmatprep.subr.mxu0 0.0
    %488 = vmatpush2.msra.mxu0 0.0
    %489 = vmatprep.subr.mxu0 0.0
    %490 = vmatpush2.msra.mxu0 0.0
    %491 = vmatprep.subr.mxu0 0.0
    %492 = vmatpush2.msra.mxu0 0.0
    %493 = vmatprep.subr.mxu0 0.0
    %494 = vmatpush2.msra.mxu0 0.0
    %495 = vmatprep.subr.mxu0 0.0
    %496 = vmatpush2.msra.mxu0 0.0
    %497 = vmatprep.subr.mxu0 0.0
    %498 = vmatpush2.msra.mxu0 0.0
    %499 = vmatprep.subr.mxu0 0.0
    %500 = vmatpush2.msra.mxu0 0.0
    %501 = vmatprep.mubr.f32.mxu0 0.0
    %502 = vmatmul.mubr.f32.gmra.mxu0 %v432
    %v503 = vpop.f32.mrf.mxu0
    %v504 = vadd.f32 %v436, %v503
    %v505 = vpop.f32.mrf.mxu0
    %506 = vdwg.mxu0
    %v507 = vtanh.pop %v504
    %s508 = scalar_lea.vmem [#allocation8], 40
    %509 = vst [vmem:[%s508] sm:$0xff] %v507
    %s510 = scalar_lea.vmem [#allocation3], 48
    %v511 = vld [vmem:[%s510] sm:$0xff]
    %512 = vmatprep.subr.mxu0 0.0
    %513 = vmatpush1.msra.mxu0 %v60
    %514 = vmatprep.subr.mxu0 0.0
    %515 = vmatpush1.msra.mxu0 %v59
    %516 = vmatprep.subr.mxu0 0.0
    %517 = vmatpush1.msra.mxu0 %v58
    %518 = vmatprep.subr.mxu0 0.0
    %519 = vmatpush1.msra.mxu0 %v57
    %520 = vmatprep.subr.mxu0 0.0
    %521 = vmatpush1.msra.mxu0 %v56
    %522 = vmatprep.subr.mxu0 0.0
    %523 = vmatpush1.msra.mxu0 %v55
    %524 = vmatprep.subr.mxu0 0.0
    %525 = vmatpush1.msra.mxu0 %v54
    %526 = vmatprep.subr.mxu0 0.0
    %527 = vmatpush1.msra.mxu0 %v53
    %528 = vmatprep.subr.mxu0 0.0
    %529 = vmatpush1.msra.mxu0 %v52
    %530 = vmatprep.subr.mxu0 0.0
    %531 = vmatpush1.msra.mxu0 %v51
    %532 = vmatprep.subr.mxu0 0.0
    %533 = vmatpush1.msra.mxu0 %v50
    %534 = vmatprep.subr.mxu0 0.0
    %535 = vmatpush1.msra.mxu0 %v49
    %536 = vmatprep.subr.mxu0 0.0
    %537 = vmatpush1.msra.mxu0 %v48
    %538 = vmatprep.subr.mxu0 0.0
    %539 = vmatpush1.msra.mxu0 %v47
    %540 = vmatprep.subr.mxu0 0.0
    %541 = vmatpush1.msra.mxu0 %v46
    %542 = vmatprep.subr.mxu0 0.0
    %543 = vmatpush1.msra.mxu0 %v45
    %544 = vmatprep.subr.mxu0 0.0
    %545 = vmatpush2.msra.mxu0 0.0
    %546 = vmatprep.subr.mxu0 0.0
    %547 = vmatpush2.msra.mxu0 0.0
    %548 = vmatprep.subr.mxu0 0.0
    %549 = vmatpush2.msra.mxu0 0.0
    %550 = vmatprep.subr.mxu0 0.0
    %551 = vmatpush2.msra.mxu0 0.0
    %552 = vmatprep.subr.mxu0 0.0
    %553 = vmatpush2.msra.mxu0 0.0
    %554 = vmatprep.subr.mxu0 0.0
    %555 = vmatpush2.msra.mxu0 0.0
    %556 = vmatprep.subr.mxu0 0.0
    %557 = vmatpush2.msra.mxu0 0.0
    %558 = vmatprep.subr.mxu0 0.0
    %559 = vmatpush2.msra.mxu0 0.0
    %560 = vmatprep.subr.mxu0 0.0
    %561 = vmatpush2.msra.mxu0 0.0
    %562 = vmatprep.subr.mxu0 0.0
    %563 = vmatpush2.msra.mxu0 0.0
    %564 = vmatprep.subr.mxu0 0.0
    %565 = vmatpush2.msra.mxu0 0.0
    %566 = vmatprep.subr.mxu0 0.0
    %567 = vmatpush2.msra.mxu0 0.0
    %568 = vmatprep.subr.mxu0 0.0
    %569 = vmatpush2.msra.mxu0 0.0
    %570 = vmatprep.subr.mxu0 0.0
    %571 = vmatpush2.msra.mxu0 0.0
    %572 = vmatprep.subr.mxu0 0.0
    %573 = vmatpush2.msra.mxu0 0.0
    %574 = vmatprep.subr.mxu0 0.0
    %575 = vmatpush2.msra.mxu0 0.0
    %576 = vmatprep.mubr.f32.mxu0 0.0
    %577 = vmatmul.mubr.f32.gmra.mxu0 %v507
    %v578 = vpop.f32.mrf.mxu0
    %v579 = vadd.f32 %v511, %v578
    %v580 = vpop.f32.mrf.mxu0
    %581 = vdwg.mxu0
    %v582 = vtanh.pop %v579
    %s583 = scalar_lea.vmem [#allocation8], 48
    %584 = vst [vmem:[%s583] sm:$0xff] %v582
    %s585 = scalar_lea.vmem [#allocation3], 56
    %v586 = vld [vmem:[%s585] sm:$0xff]
    %587 = vmatprep.subr.mxu0 0.0
    %588 = vmatpush1.msra.mxu0 %v60
    %589 = vmatprep.subr.mxu0 0.0
    %590 = vmatpush1.msra.mxu0 %v59
    %591 = vmatprep.subr.mxu0 0.0
    %592 = vmatpush1.msra.mxu0 %v58
    %593 = vmatprep.subr.mxu0 0.0
    %594 = vmatpush1.msra.mxu0 %v57
    %595 = vmatprep.subr.mxu0 0.0
    %596 = vmatpush1.msra.mxu0 %v56
    %597 = vmatprep.subr.mxu0 0.0
    %598 = vmatpush1.msra.mxu0 %v55
    %599 = vmatprep.subr.mxu0 0.0
    %600 = vmatpush1.msra.mxu0 %v54
    %601 = vmatprep.subr.mxu0 0.0
    %602 = vmatpush1.msra.mxu0 %v53
    %603 = vmatprep.subr.mxu0 0.0
    %604 = vmatpush1.msra.mxu0 %v52
    %605 = vmatprep.subr.mxu0 0.0
    %606 = vmatpush1.msra.mxu0 %v51
    %607 = vmatprep.subr.mxu0 0.0
    %608 = vmatpush1.msra.mxu0 %v50
    %609 = vmatprep.subr.mxu0 0.0
    %610 = vmatpush1.msra.mxu0 %v49
    %611 = vmatprep.subr.mxu0 0.0
    %612 = vmatpush1.msra.mxu0 %v48
    %613 = vmatprep.subr.mxu0 0.0
    %614 = vmatpush1.msra.mxu0 %v47
    %615 = vmatprep.subr.mxu0 0.0
    %616 = vmatpush1.msra.mxu0 %v46
    %617 = vmatprep.subr.mxu0 0.0
    %618 = vmatpush1.msra.mxu0 %v45
    %619 = vmatprep.subr.mxu0 0.0
    %620 = vmatpush2.msra.mxu0 0.0
    %621 = vmatprep.subr.mxu0 0.0
    %622 = vmatpush2.msra.mxu0 0.0
    %623 = vmatprep.subr.mxu0 0.0
    %624 = vmatpush2.msra.mxu0 0.0
    %625 = vmatprep.subr.mxu0 0.0
    %626 = vmatpush2.msra.mxu0 0.0
    %627 = vmatprep.subr.mxu0 0.0
    %628 = vmatpush2.msra.mxu0 0.0
    %629 = vmatprep.subr.mxu0 0.0
    %630 = vmatpush2.msra.mxu0 0.0
    %631 = vmatprep.subr.mxu0 0.0
    %632 = vmatpush2.msra.mxu0 0.0
    %633 = vmatprep.subr.mxu0 0.0
    %634 = vmatpush2.msra.mxu0 0.0
    %635 = vmatprep.subr.mxu0 0.0
    %636 = vmatpush2.msra.mxu0 0.0
    %637 = vmatprep.subr.mxu0 0.0
    %638 = vmatpush2.msra.mxu0 0.0
    %639 = vmatprep.subr.mxu0 0.0
    %640 = vmatpush2.msra.mxu0 0.0
    %641 = vmatprep.subr.mxu0 0.0
    %642 = vmatpush2.msra.mxu0 0.0
    %643 = vmatprep.subr.mxu0 0.0
    %644 = vmatpush2.msra.mxu0 0.0
    %645 = vmatprep.subr.mxu0 0.0
    %646 = vmatpush2.msra.mxu0 0.0
    %647 = vmatprep.subr.mxu0 0.0
    %648 = vmatpush2.msra.mxu0 0.0
    %649 = vmatprep.subr.mxu0 0.0
    %650 = vmatpush2.msra.mxu0 0.0
    %651 = vmatprep.mubr.f32.mxu0 0.0
    %652 = vmatmul.mubr.f32.gmra.mxu0 %v582
    %v653 = vpop.f32.mrf.mxu0
    %v654 = vadd.f32 %v586, %v653
    %v655 = vpop.f32.mrf.mxu0
    %656 = vdwg.mxu0
    %v657 = vtanh.pop %v654
    %s658 = scalar_lea.vmem [#allocation8], 56
    %659 = vst [vmem:[%s658] sm:$0xff] %v657
    %s660 = scalar_lea.vmem [#allocation3], 64
    %v661 = vld [vmem:[%s660] sm:$0xff]
    %662 = vmatprep.subr.mxu0 0.0
    %663 = vmatpush1.msra.mxu0 %v60
    %664 = vmatprep.subr.mxu0 0.0
    %665 = vmatpush1.msra.mxu0 %v59
    %666 = vmatprep.subr.mxu0 0.0
    %667 = vmatpush1.msra.mxu0 %v58
    %668 = vmatprep.subr.mxu0 0.0
    %669 = vmatpush1.msra.mxu0 %v57
    %670 = vmatprep.subr.mxu0 0.0
    %671 = vmatpush1.msra.mxu0 %v56
    %672 = vmatprep.subr.mxu0 0.0
    %673 = vmatpush1.msra.mxu0 %v55
    %674 = vmatprep.subr.mxu0 0.0
    %675 = vmatpush1.msra.mxu0 %v54
    %676 = vmatprep.subr.mxu0 0.0
    %677 = vmatpush1.msra.mxu0 %v53
    %678 = vmatprep.subr.mxu0 0.0
    %679 = vmatpush1.msra.mxu0 %v52
    %680 = vmatprep.subr.mxu0 0.0
    %681 = vmatpush1.msra.mxu0 %v51
    %682 = vmatprep.subr.mxu0 0.0
    %683 = vmatpush1.msra.mxu0 %v50
    %684 = vmatprep.subr.mxu0 0.0
    %685 = vmatpush1.msra.mxu0 %v49
    %686 = vmatprep.subr.mxu0 0.0
    %687 = vmatpush1.msra.mxu0 %v48
    %688 = vmatprep.subr.mxu0 0.0
    %689 = vmatpush1.msra.mxu0 %v47
    %690 = vmatprep.subr.mxu0 0.0
    %691 = vmatpush1.msra.mxu0 %v46
    %692 = vmatprep.subr.mxu0 0.0
    %693 = vmatpush1.msra.mxu0 %v45
    %694 = vmatprep.subr.mxu0 0.0
    %695 = vmatpush2.msra.mxu0 0.0
    %696 = vmatprep.subr.mxu0 0.0
    %697 = vmatpush2.msra.mxu0 0.0
    %698 = vmatprep.subr.mxu0 0.0
    %699 = vmatpush2.msra.mxu0 0.0
    %700 = vmatprep.subr.mxu0 0.0
    %701 = vmatpush2.msra.mxu0 0.0
    %702 = vmatprep.subr.mxu0 0.0
    %703 = vmatpush2.msra.mxu0 0.0
    %704 = vmatprep.subr.mxu0 0.0
    %705 = vmatpush2.msra.mxu0 0.0
    %706 = vmatprep.subr.mxu0 0.0
    %707 = vmatpush2.msra.mxu0 0.0
    %708 = vmatprep.subr.mxu0 0.0
    %709 = vmatpush2.msra.mxu0 0.0
    %710 = vmatprep.subr.mxu0 0.0
    %711 = vmatpush2.msra.mxu0 0.0
    %712 = vmatprep.subr.mxu0 0.0
    %713 = vmatpush2.msra.mxu0 0.0
    %714 = vmatprep.subr.mxu0 0.0
    %715 = vmatpush2.msra.mxu0 0.0
    %716 = vmatprep.subr.mxu0 0.0
    %717 = vmatpush2.msra.mxu0 0.0
    %718 = vmatprep.subr.mxu0 0.0
    %719 = vmatpush2.msra.mxu0 0.0
    %720 = vmatprep.subr.mxu0 0.0
    %721 = vmatpush2.msra.mxu0 0.0
    %722 = vmatprep.subr.mxu0 0.0
    %723 = vmatpush2.msra.mxu0 0.0
    %724 = vmatprep.subr.mxu0 0.0
    %725 = vmatpush2.msra.mxu0 0.0
    %726 = vmatprep.mubr.f32.mxu0 0.0
    %727 = vmatmul.mubr.f32.gmra.mxu0 %v657
    %v728 = vpop.f32.mrf.mxu0
    %v729 = vadd.f32 %v661, %v728
    %v730 = vpop.f32.mrf.mxu0
    %731 = vdwg.mxu0
    %v732 = vtanh.pop %v729
    %s733 = scalar_lea.vmem [#allocation8], 64
    %734 = vst [vmem:[%s733] sm:$0xff] %v732
    %735 = vst [vmem:[#allocation2] sm:$0xff] %v732
    // Predicated region
    $region22: #{tpu_custom_call.1} parent=1 // pred_check
      _
    $region23: #{tpu_custom_call.1} parent=1 // pred_check_branch
      %737 = sbr.rel (0) target = $region25
    $region24: #{tpu_custom_call.1} parent=1 // pred_region
      %s739 = ssub.s32 1152, 1152
      %740 = vsyncadd [#allocation5], %s739
      %s741 = sshll.u32 [#allocation8], 4
      %s742 = int_to_ptr.vmem [resolvable:$true] %s741
      %747 = dma.vmem_to_hbm [thread:$0]  %s742, 1152, %s2, [#allocation5], 128, 128, 8
    $region25: #{tpu_custom_call.1} parent=1 // pred_fallthru
      _
    // Predicated region
    $region26: #{tpu_custom_call.1} parent=1 // pred_check
      _
    $region27: #{tpu_custom_call.1} parent=1 // pred_check_branch
      %749 = sbr.rel (0) target = $region29
    $region28: #{tpu_custom_call.1} parent=1 // pred_region
      %750 = dma.done [#allocation5], 1152
    $region29: #{tpu_custom_call.1} parent=1 // pred_fallthru
      _
    %751 = vsyncpa [#allocation4], 1
    %752 = vsyncpa [#allocation7], 1
    %753 = vsyncpa [#allocation5], 1

</llo_original>
